<compile_context>
chip_gen: v7x
topology: tpu7x:2x2x1
jax: 0.10.0
libtpu: 0.0.40
codegen_flags: <defaults>
</compile_context>

<pallas_src>
import functools

import jax
import jax.numpy as jnp
from jax.experimental import pallas as pl
from jax.experimental.pallas import tpu as pltpu

_LANE = 128


def _round_up(x, m):
    return ((x + m - 1) // m) * m


# ----------------------------------------------------------------------------
# Shared in-kernel math: 3-tap channel conv (k=3, pad=1, no bias) + sigmoid
# on the pooled per-channel means.  O(C) VPU work, no MXU, no [C,C] matrix.
# ----------------------------------------------------------------------------
def _gate_from_pooled(y, w_ref):
    """y: [B, C] f32 pooled means. Returns sigmoid(w0*y[i-1]+w1*y[i]+w2*y[i+1])."""
    b, c = y.shape
    w0 = w_ref[0]
    w1 = w_ref[1]
    w2 = w_ref[2]
    zero = jnp.zeros((b, 1), jnp.float32)
    if c > 1:
        y_prev = jnp.concatenate([zero, y[:, : c - 1]], axis=1)  # y[i-1], 0 at i=0
        y_next = jnp.concatenate([y[:, 1:], zero], axis=1)       # y[i+1], 0 at i=C-1
    else:
        y_prev = zero
        y_next = zero
    z = w0 * y_prev + w1 * y + w2 * y_next
    return jax.nn.sigmoid(z)


# ----------------------------------------------------------------------------
# Fused single-pass kernel: one [Nb, C, HWp] slab per grid step.
# ----------------------------------------------------------------------------
def _eca_fused_kernel(x_ref, w_ref, o_ref, *, inv_hw):
    x = x_ref[...]                                            # [Nb, C, HWp] native dtype
    y = jnp.sum(x.astype(jnp.float32), axis=-1) * inv_hw      # [Nb, C]  f32 (XLU reduce)
    gate = _gate_from_pooled(y, w_ref)                        # [Nb, C]  f32
    o_ref[...] = x * gate[:, :, None].astype(x.dtype)         # lane-broadcast scale


# ----------------------------------------------------------------------------
# Fallback: two-kernel HW-tiled path (pool+gate, then scale).
# ----------------------------------------------------------------------------
def _eca_pool_kernel(x_ref, w_ref, gate_ref, *, inv_hw):
    h = pl.program_id(1)

    @pl.when(h == 0)
    def _():
        gate_ref[...] = jnp.zeros_like(gate_ref)

    gate_ref[...] += jnp.sum(
        x_ref[...].astype(jnp.float32), axis=-1, keepdims=True)   # [1, C, 1]

    @pl.when(h == pl.num_programs(1) - 1)
    def _():
        y = gate_ref[...][:, :, 0] * inv_hw                       # [1, C]
        gate_ref[...] = _gate_from_pooled(y, w_ref)[:, :, None]


def _eca_scale_kernel(x_ref, gate_ref, o_ref):
    x = x_ref[...]                                                # [1, C, hw_tile]
    o_ref[...] = x * gate_ref[...].astype(x.dtype)


# ----------------------------------------------------------------------------
# Generation-aware sizing.
# ----------------------------------------------------------------------------
def _vmem_limit_bytes():
    try:
        vmem_cap = pltpu.get_tpu_info().vmem_capacity_bytes
    except Exception:
        vmem_cap = 128 << 20
    # ~40 MiB on v7x (64 MiB physical), 64 MiB on v5e/v6e (128 MiB physical).
    return int(min(64 << 20, (vmem_cap * 5) // 8))


# ----------------------------------------------------------------------------
# Wrappers.
# ----------------------------------------------------------------------------
def _eca_fused(x_nchw, taps, *, hwp, inv_hw, block_budget, vmem_limit, donate_input):
    n, c, h, w = x_nchw.shape
    hw = h * w
    dtype = x_nchw.dtype
    elem = jnp.dtype(dtype).itemsize

    x = x_nchw.reshape(n, c, hw)
    if hwp != hw:
        x = jnp.pad(x, ((0, 0), (0, 0), (0, hwp - hw)))   # zero pad; mean still uses 1/hw

    per_image = c * hwp * elem
    nb = max(1, min(n, block_budget // per_image))
    # Keep >= 4 grid steps when N allows: >= 2 pipelined steps per TC on v7x,
    # and deeper DMA/compute overlap on single-TC v5e/v6e.
    nb = max(1, min(nb, -(-n // 4)))
    grid = (pl.cdiv(n, nb),)

    kernel = functools.partial(_eca_fused_kernel, inv_hw=inv_hw)

    out = pl.pallas_call(
        kernel,
        out_shape=jax.ShapeDtypeStruct((n, c, hwp), dtype),
        grid_spec=pltpu.PrefetchScalarGridSpec(
            num_scalar_prefetch=0,
            grid=grid,
            in_specs=[
                pl.BlockSpec((nb, c, hwp), lambda i: (i, 0, 0)),        # image slab
                pl.BlockSpec(memory_space=pltpu.MemorySpace.SMEM),      # 3 conv taps
            ],
            out_specs=pl.BlockSpec((nb, c, hwp), lambda i: (i, 0, 0)),
        ),
        compiler_params=pltpu.CompilerParams(
            dimension_semantics=("parallel",),
            vmem_limit_bytes=vmem_limit,
        ),
        input_output_aliases={0: 0} if donate_input else {},
    )(x, taps)

    if hwp != hw:
        out = out[:, :, :hw]
    return out.reshape(n, c, h, w)


def _eca_split(x_nchw, taps, *, inv_hw, block_budget, vmem_limit, max_hw_tile=None):
    n, c, h, w = x_nchw.shape
    hw = h * w
    dtype = x_nchw.dtype
    elem = jnp.dtype(dtype).itemsize

    # Lane-dense spatial tile that fits the per-step budget.
    hw_tile = max(_LANE, (block_budget // (c * elem)) // _LANE * _LANE)
    hw_tile = min(hw_tile, _round_up(hw, _LANE))
    if max_hw_tile is not None:
        hw_tile = min(hw_tile, max(_LANE, (max_hw_tile // _LANE) * _LANE))
    hwp = _round_up(hw, hw_tile)
    n_hw = hwp // hw_tile

    x = x_nchw.reshape(n, c, hw)
    if hwp != hw:
        x = jnp.pad(x, ((0, 0), (0, 0), (0, hwp - hw)))

    pool_kernel = functools.partial(_eca_pool_kernel, inv_hw=inv_hw)
    gate = pl.pallas_call(
        pool_kernel,
        out_shape=jax.ShapeDtypeStruct((n, c, 1), jnp.float32),
        grid_spec=pltpu.PrefetchScalarGridSpec(
            num_scalar_prefetch=0,
            grid=(n, n_hw),
            in_specs=[
                pl.BlockSpec((1, c, hw_tile), lambda i, j: (i, 0, j)),
                pl.BlockSpec(memory_space=pltpu.MemorySpace.SMEM),
            ],
            out_specs=pl.BlockSpec((1, c, 1), lambda i, j: (i, 0, 0)),
        ),
        compiler_params=pltpu.CompilerParams(
            dimension_semantics=("parallel", "arbitrary"),
            vmem_limit_bytes=vmem_limit,
        ),
    )(x, taps)

    out = pl.pallas_call(
        _eca_scale_kernel,
        out_shape=jax.ShapeDtypeStruct((n, c, hwp), dtype),
        grid_spec=pltpu.PrefetchScalarGridSpec(
            num_scalar_prefetch=0,
            grid=(n, n_hw),
            in_specs=[
                pl.BlockSpec((1, c, hw_tile), lambda i, j: (i, 0, j)),
                pl.BlockSpec((1, c, 1), lambda i, j: (i, 0, 0)),
            ],
            out_specs=pl.BlockSpec((1, c, hw_tile), lambda i, j: (i, 0, j)),
        ),
        compiler_params=pltpu.CompilerParams(
            dimension_semantics=("parallel", "parallel"),
            vmem_limit_bytes=vmem_limit,
        ),
    )(x, gate)

    if hwp != hw:
        out = out[:, :, :hw]
    return out.reshape(n, c, h, w)


def eca_pallas(x_nchw, w3, *, donate_input=False, force_split=False, max_hw_tile=None):
    """ECA layer forward: x * sigmoid(conv1d_k3(avg_pool(x))) broadcast over HxW."""
    n, c, h, w = x_nchw.shape
    hw = h * w
    dtype = x_nchw.dtype
    elem = jnp.dtype(dtype).itemsize
    taps = jnp.asarray(w3, jnp.float32).reshape(3)
    inv_hw = 1.0 / hw

    vmem_limit = _vmem_limit_bytes()
    # Per-step live set ~= in + out, each double-buffered (+ an f32 reduce temp
    # for sub-32-bit inputs), plus 4 MiB slack for compiler-internal scratch.
    denom = 4 if dtype == jnp.float32 else 6
    block_budget = max(1 << 20, (vmem_limit - (4 << 20)) // denom)

    hwp = _round_up(hw, _LANE)
    per_image = c * hwp * elem

    if per_image <= block_budget and not force_split:
        return _eca_fused(x_nchw, taps, hwp=hwp, inv_hw=inv_hw,
                          block_budget=block_budget, vmem_limit=vmem_limit,
                          donate_input=donate_input)
    return _eca_split(x_nchw, taps, inv_hw=inv_hw,
                      block_budget=block_budget, vmem_limit=vmem_limit,
                      max_hw_tile=max_hw_tile)


# ----------------------------------------------------------------------------
# Pure-JAX reference (mirrors the PyTorch eca_layer.forward).
# ----------------------------------------------------------------------------
def eca_reference(x, w3):
    n, c, h, w = x.shape
    y = jnp.mean(x, axis=(2, 3))                     # AdaptiveAvgPool2d(1)
    yp = jnp.pad(y, ((0, 0), (1, 1)))                # Conv1d(1,1,3,pad=1,bias=False)
    z = w3[0] * yp[:, 0:c] + w3[1] * yp[:, 1:c + 1] + w3[2] * yp[:, 2:c + 2]
    gate = jax.nn.sigmoid(z)
    return x * gate[:, :, None, None]


# ----------------------------------------------------------------------------
if __name__ == "__main__":
    key = jax.random.PRNGKey(0)
    kx, kw = jax.random.split(key)

    N, C, H, W = 4, 8, 16, 16                        # HW = 256 (already lane-dense)
    x = jax.random.normal(kx, (N, C, H, W), jnp.float32)
    w3 = 0.5 * jax.random.normal(kw, (3,), jnp.float32)   # conv1d(1,1,3) taps

    ref = eca_reference(x, w3)

    # Fused single-pass path.
    out = jax.block_until_ready(jax.jit(eca_pallas)(x, w3))
    assert out.shape == x.shape
    err = float(jnp.max(jnp.abs(out - ref)))
    if err > 1e-5:
        raise SystemExit(f"fused path mismatch vs reference: max abs err {err}")

    # Also exercise the HW-tiled two-kernel fallback once (128-wide spatial tiles).
    out2 = jax.block_until_ready(
        jax.jit(functools.partial(eca_pallas, force_split=True, max_hw_tile=128))(x, w3))
    err2 = float(jnp.max(jnp.abs(out2 - ref)))
    if err2 > 1e-5:
        raise SystemExit(f"split path mismatch vs reference: max abs err {err2}")

    print("KERNEL_OK")
</pallas_src>

<mosaic_0001>
module attributes {stable_mosaic.version = 11 : i64} {
  func.func @_eca_fused_kernel(%arg0: i32, %arg1: memref<1x8x256xf32, #tpu.memory_space<vmem>>, %arg2: memref<3xf32, #tpu.memory_space<smem>>, %arg3: memref<1x8x256xf32, #tpu.memory_space<vmem>>) attributes {dimension_semantics = [#tpu.dimension_semantics<parallel>], iteration_bounds = array<i64: 4>, scalar_prefetch = 0 : i64, scratch_operands = 0 : i64, tpu.core_type = #tpu.core_type<tc>, window_params = [{transform_indices = @transform_0, window_bounds = array<i64: 1, 8, 256>}, {transform_indices = @transform_1, window_bounds = array<i64: 3>}, {transform_indices = @transform_2, window_bounds = array<i64: 1, 8, 256>}]} {
    %c0 = arith.constant 0 : index
    %c0_0 = arith.constant 0 : index
    %c0_1 = arith.constant 0 : index
    %0 = vector.load %arg1[%c0, %c0_0, %c0_1] : memref<1x8x256xf32, #tpu.memory_space<vmem>>, vector<1x8x256xf32>
    %cst = arith.constant dense<0.000000e+00> : vector<1x8xf32>
    %1 = vector.multi_reduction <add>, %0, %cst [2] : vector<1x8x256xf32> to vector<1x8xf32>
    %cst_2 = arith.constant 3.906250e-03 : f32
    %2 = vector.broadcast %cst_2 : f32 to vector<1x8xf32>
    %3 = arith.mulf %1, %2 : vector<1x8xf32>
    %c0_3 = arith.constant 0 : index
    %4 = memref.load %arg2[%c0_3] : memref<3xf32, #tpu.memory_space<smem>>
    %c1 = arith.constant 1 : index
    %5 = memref.load %arg2[%c1] : memref<3xf32, #tpu.memory_space<smem>>
    %c2 = arith.constant 2 : index
    %6 = memref.load %arg2[%c2] : memref<3xf32, #tpu.memory_space<smem>>
    %cst_4 = arith.constant 0.000000e+00 : f32
    %7 = vector.broadcast %cst_4 : f32 to vector<1x1xf32>
    %8 = vector.extract_strided_slice %3 {offsets = [0, 0], sizes = [1, 7], strides = [1, 1]} : vector<1x8xf32> to vector<1x7xf32>
    %9 = tpu.concatenate %7, %8 in 1 : vector<1x1xf32>, vector<1x7xf32> -> vector<1x8xf32>
    %10 = vector.extract_strided_slice %3 {offsets = [0, 1], sizes = [1, 7], strides = [1, 1]} : vector<1x8xf32> to vector<1x7xf32>
    %11 = tpu.concatenate %10, %7 in 1 : vector<1x7xf32>, vector<1x1xf32> -> vector<1x8xf32>
    %12 = vector.broadcast %4 : f32 to vector<1x8xf32>
    %13 = arith.mulf %12, %9 : vector<1x8xf32>
    %14 = vector.broadcast %5 : f32 to vector<1x8xf32>
    %15 = arith.mulf %14, %3 : vector<1x8xf32>
    %16 = arith.addf %13, %15 : vector<1x8xf32>
    %17 = vector.broadcast %6 : f32 to vector<1x8xf32>
    %18 = arith.mulf %17, %11 : vector<1x8xf32>
    %19 = arith.addf %16, %18 : vector<1x8xf32>
    %20 = arith.negf %19 : vector<1x8xf32>
    %21 = math.exp %20 : vector<1x8xf32>
    %cst_5 = arith.constant 1.000000e+00 : f32
    %22 = vector.broadcast %cst_5 : f32 to vector<1x8xf32>
    %23 = arith.addf %22, %21 : vector<1x8xf32>
    %24 = arith.divf %22, %23 : vector<1x8xf32>
    %25 = vector.shape_cast %24 : vector<1x8xf32> to vector<1x8x1xf32>
    %26 = vector.broadcast %25 : vector<1x8x1xf32> to vector<1x8x256xf32>
    %27 = arith.mulf %0, %26 : vector<1x8x256xf32>
    %c0_6 = arith.constant 0 : index
    %c0_7 = arith.constant 0 : index
    %c0_8 = arith.constant 0 : index
    %28 = vector.load %arg3[%c0_6, %c0_7, %c0_8] : memref<1x8x256xf32, #tpu.memory_space<vmem>>, vector<1x8x256xf32>
    tpu.vector_store %arg3[%c0_6, %c0_7, %c0_8], %27 {strides = array<i32>} : memref<1x8x256xf32, #tpu.memory_space<vmem>>, vector<1x8x256xf32>,
    return
  }
  func.func @transform_0(%arg0: i32) -> (i32, i32, i32) {
    %c0_i32 = arith.constant 0 : i32
    %c0_i32_0 = arith.constant 0 : i32
    %c0_i32_1 = arith.constant 0 : i32
    return %arg0, %c0_i32, %c0_i32_0 : i32, i32, i32
  }
  func.func @transform_1(%arg0: i32) -> i32 {
    %c0_i32 = arith.constant 0 : i32
    %c0_i32_0 = arith.constant 0 : i32
    return %c0_i32 : i32
  }
  func.func @transform_2(%arg0: i32) -> (i32, i32, i32) {
    %c0_i32 = arith.constant 0 : i32
    %c0_i32_0 = arith.constant 0 : i32
    %c0_i32_1 = arith.constant 0 : i32
    return %arg0, %c0_i32, %c0_i32_0 : i32, i32, i32
  }
}

</mosaic_0001>

<llo_original>
// kernel: eca_pallas.1
$region0: #{eca_pallas.1}
  #allocation0 [shape = 'u32[]', space=smem, size = 0x4, offset = 0x4, fixed_abs, tag = 'smem constant byte address 0x4 - core index']
  #allocation1 [shape = 'u32[144,128]{1,0:T(1,128)}', space=vmem, size = 0x12000, scoped, tag = 'internal scratch']
  %s0 = inlined_call_operand.hbm [shape: f32[4,8,256], index: 0, kind: input, shape index: {}]
  %s1 = inlined_call_operand.hbm [shape: f32[3], index: 1, kind: input, shape index: {}]
  %s2 = inlined_call_operand.hbm [shape: f32[4,8,256], index: 2, kind: output, shape index: {}]
  %s3 = sld [smem:[#allocation0]]
  $region49: #{eca_pallas.1} parent=0
    _
  %s5 = ssub.s32 1, %s3
  %s6 = scalar_select 0, %s5, %s3
  $region1: #{eca_pallas.1} parent=0
    #allocation2 [shape = 'u8[16384]{0}', space=vmem, size = 0x4000, scoped, tag = 'input window, operand 0']
    #allocation3 [shape = 's32[2]{0}', space=sflag, size = 0x8, scoped, tag = 'scoped memory for eca_pallas.1']
    #allocation4 [shape = 's32[2]{0}', space=sflag, size = 0x8, scoped, tag = 'scoped memory for eca_pallas.1']
    #allocation5 [shape = 's32[2]{0}', space=sflag, size = 0x8, scoped, tag = 'scoped memory for eca_pallas.1']
    #allocation6 [shape = 'u8[512]{0}', space=smem, size = 0x200, scoped, tag = 'input window, operand 1, single buffered']
    #allocation7 [shape = 'u8[16384]{0}', space=vmem, size = 0x4000, scoped, tag = 'output window, operand 0']
    %7 = vsyncpa [#allocation3], 0
    %s8 = scalar_lea.sflag [#allocation3], 1
    %9 = vsyncpa %s8, 0
    %10 = vsyncpa [#allocation5], 0
    %11 = vsyncpa [#allocation4], 0
    %s12 = scalar_lea.sflag [#allocation4], 1
    %13 = vsyncpa %s12, 0
    loop: start=0, step=1, limit=6
    $region2: #{eca_pallas.1} parent=1 // loop_pre_header
      _
    $region3: #{eca_pallas.1} parent=1 // loop_header
      %s15 = sphi 0, %s19
      %p16 = scmp.ge.s32.totalorder %s15, 6
      %s25 = sphi 0, %s27
      %s28 = sphi 0, %s25
      %s29 = sphi 0, %s28
      %s45 = sphi 0, %s29
      %s49 = sphi 0, %s49
      %s51 = sphi 0, %s49
      %s52 = sphi 0, %s51
      %s66 = sphi 0, %s52
      %s72 = sphi 0, %s74
      %s75 = sphi 0, %s72
      %s76 = sphi 0, %s75
      %s92 = sphi 0, %s76
    $region4: #{eca_pallas.1} parent=1 // loop_header_branch
      %18 = sbr.rel (%p16) target = $region8
    $region5: #{eca_pallas.1} parent=1 // loop_body
      %s20 = ssub.s32 %s15, 1
      %s21 = ssub.s32 %s15, 2
      %s22 = sadd.s32 %s15, 1
      %s23 = ssub.s32 %s15, %s22
      %p24 = scmp.eq.s32.totalorder %s23, 0
      %s26 = sadd.s32 %s25, 1
      %s27 = scalar_select %p24, %s25, %s26
      %p30 = pneg %p24
      %p31 = scmp.eq.s32.totalorder %s15, 3
      %p32 = por %p30, %p31
      %p33 = scmp.ne.s32.totalorder %s25, %s28
      %p34 = scmp.eq.s32.totalorder %s15, 0
      %p35 = por %p33, %p34
      %p36 = scmp.ne.s32.totalorder %s25, %s28
      %p37 = scmp.eq.s32.totalorder %s20, 3
      %p38 = por %p36, %p37
      %p39 = scmp.ne.s32.totalorder %s28, %s29
      %p40 = scmp.eq.s32.totalorder %s20, 0
      %p41 = por %p39, %p40
      %p42 = scmp.ne.s32.totalorder %s28, %s29
      %p43 = scmp.eq.s32.totalorder %s21, 3
      %p44 = por %p42, %p43
      %p46 = scmp.ne.s32.totalorder %s29, %s45
      %p47 = scmp.eq.s32.totalorder %s21, 0
      %p48 = por %p46, %p47
      %s50 = sadd.s32 %s49, 1
      %p53 = scmp.eq.s32.totalorder %s15, 3
      %p54 = scmp.ne.s32.totalorder %s49, %s51
      %p55 = scmp.eq.s32.totalorder %s15, 0
      %p56 = por %p54, %p55
      %p57 = scmp.ne.s32.totalorder %s49, %s51
      %p58 = scmp.eq.s32.totalorder %s20, 3
      %p59 = por %p57, %p58
      %p60 = scmp.ne.s32.totalorder %s51, %s52
      %p61 = scmp.eq.s32.totalorder %s20, 0
      %p62 = por %p60, %p61
      %p63 = scmp.ne.s32.totalorder %s51, %s52
      %p64 = scmp.eq.s32.totalorder %s21, 3
      %p65 = por %p63, %p64
      %p67 = scmp.ne.s32.totalorder %s52, %s66
      %p68 = scmp.eq.s32.totalorder %s21, 0
      %p69 = por %p67, %p68
      %s70 = ssub.s32 %s15, %s22
      %p71 = scmp.eq.s32.totalorder %s70, 0
      %s73 = sadd.s32 %s72, 1
      %s74 = scalar_select %p71, %s72, %s73
      %p77 = pneg %p71
      %p78 = scmp.eq.s32.totalorder %s15, 3
      %p79 = por %p77, %p78
      %p80 = scmp.ne.s32.totalorder %s72, %s75
      %p81 = scmp.eq.s32.totalorder %s15, 0
      %p82 = por %p80, %p81
      %p83 = scmp.ne.s32.totalorder %s72, %s75
      %p84 = scmp.eq.s32.totalorder %s20, 3
      %p85 = por %p83, %p84
      %p86 = scmp.ne.s32.totalorder %s75, %s76
      %p87 = scmp.eq.s32.totalorder %s20, 0
      %p88 = por %p86, %p87
      %p89 = scmp.ne.s32.totalorder %s75, %s76
      %p90 = scmp.eq.s32.totalorder %s21, 3
      %p91 = por %p89, %p90
      %p93 = scmp.ne.s32.totalorder %s76, %s92
      %p94 = scmp.eq.s32.totalorder %s21, 0
      %p95 = por %p93, %p94
      %p96 = scmp.le.s32.totalorder 1, %s15
      %p97 = scmp.lt.s32.totalorder %s15, 5
      %p98 = pnand %p96, %p97
      %p99 = pneg %p98
      // Predicated region
      $region9: #{eca_pallas.1} parent=5 // pred_check
        _
      $region10: #{eca_pallas.1} parent=5 // pred_check_branch
        %101 = sbr.rel (%p98) target = $region12
      $region11: #{eca_pallas.1} parent=5 // pred_region
        %s102 = ssub.s32 %s15, 1
        // Predicated region
        $region13: #{eca_pallas.1} parent=11 // pred_check
          %p103 = pneg %p62
        $region14: #{eca_pallas.1} parent=11 // pred_check_branch
          %105 = sbr.rel (%p103) target = $region16
        $region15: #{eca_pallas.1} parent=11 // pred_region
          %s107 = ssub.s32 16, 16
          %108 = vsyncadd [#allocation5], %s107
          %111 = dma.hbm_to_smem %s1, 16, [#allocation6], [#allocation5]
        $region16: #{eca_pallas.1} parent=11 // pred_fallthru
          _
      $region12: #{eca_pallas.1} parent=5 // pred_fallthru
        _
      %p112 = scmp.lt.s32.totalorder %s15, 4
      // Predicated region
      $region17: #{eca_pallas.1} parent=5 // pred_check
        %p113 = pneg %p112
      $region18: #{eca_pallas.1} parent=5 // pred_check_branch
        %115 = sbr.rel (%p113) target = $region20
      $region19: #{eca_pallas.1} parent=5 // pred_region
        // Predicated region
        $region21: #{eca_pallas.1} parent=19 // pred_check
          %p116 = pneg %p35
        $region22: #{eca_pallas.1} parent=19 // pred_check_branch
          %118 = sbr.rel (%p116) target = $region24
        $region23: #{eca_pallas.1} parent=19 // pred_region
          %s119 = sand.u32 %s25, 1
          %s120 = scalar_lea.sflag [#allocation3], %s119
          %s121 = sand.u32 %s25, 1
          %s122 = smul.addr %s121, 16
          %s123 = scalar_lea.vmem [#allocation2], %s122
          %s125 = ssub.s32 256, 256
          %126 = vsyncadd %s120, %s125
          %s127 = smul.addr %s15, 2
          %s128 = smul.addr %s127, 128
          %s129 = scalar_lea.hbm %s0, %s128
          %s131 = sshll.u32 %s123, 4
          %s132 = int_to_ptr.vmem [resolvable:$true] %s131
          %134 = dma.hbm_to_vmem [thread:$0]  %s129, 256, %s132, %s120
        $region24: #{eca_pallas.1} parent=19 // pred_fallthru
          _
      $region20: #{eca_pallas.1} parent=5 // pred_fallthru
        _
      %p135 = scmp.le.s32.totalorder 1, %s15
      %p136 = scmp.lt.s32.totalorder %s15, 5
      %p137 = pnand %p135, %p136
      %p138 = pneg %p137
      // Predicated region
      $region25: #{eca_pallas.1} parent=5 // pred_check
        _
      $region26: #{eca_pallas.1} parent=5 // pred_check_branch
        %140 = sbr.rel (%p137) target = $region28
      $region27: #{eca_pallas.1} parent=5 // pred_region
        %s141 = ssub.s32 %s15, 1
        %s142 = sand.u32 %s28, 1
        %s143 = scalar_lea.sflag [#allocation3], %s142
        %s144 = sand.u32 %s28, 1
        %s145 = smul.addr %s144, 16
        %s146 = scalar_lea.vmem [#allocation2], %s145
        // Predicated region
        $region29: #{eca_pallas.1} parent=27 // pred_check
          %p147 = pneg %p41
        $region30: #{eca_pallas.1} parent=27 // pred_check_branch
          %149 = sbr.rel (%p147) target = $region32
        $region31: #{eca_pallas.1} parent=27 // pred_region
          %150 = dma.done %s143, 256
        $region32: #{eca_pallas.1} parent=27 // pred_fallthru
          _
        // Predicated region
        $region33: #{eca_pallas.1} parent=27 // pred_check
          %p151 = pneg %p62
        $region34: #{eca_pallas.1} parent=27 // pred_check_branch
          %153 = sbr.rel (%p151) target = $region36
        $region35: #{eca_pallas.1} parent=27 // pred_region
          %154 = dma.done [#allocation5], 16
        $region36: #{eca_pallas.1} parent=27 // pred_fallthru
          _
        %155 = sfence
        %s156 = sand.u32 %s28, 1
        %s157 = scalar_lea.sflag [#allocation3], %s156
        %s158 = sand.u32 %s28, 1
        %s159 = smul.addr %s158, 16
        %s160 = scalar_lea.vmem [#allocation2], %s159
        %p161 = pneg %p41
        %p162 = pneg %p38
        %p163 = pneg %p62
        %p164 = pneg %p59
        %p165 = pneg %p88
        %p166 = pneg %p85
        %s167 = sand.u32 %s75, 1
        %s168 = scalar_lea.sflag [#allocation4], %s167
        %s169 = sand.u32 %s75, 1
        %s170 = smul.addr %s169, 16
        %s171 = scalar_lea.vmem [#allocation7], %s170
        %v172 = vld [vmem:[%s146] sm:$0xff]
        %v173 = vld [vmem:[%s146 + $0x8] sm:$0xff]
        %v174 = vadd.f32 %v172, %v173
        %175 = vadd.xlane.f32.xlu0 %v174
        %v176 = vpop.xlane.xlu0 %175
        %v177 = vmul.f32 %v176, 0.00390625
        %s178 = sld [smem:[#allocation6]]
        %s179 = sld [smem:[#allocation6 + $0x1]]
        %s180 = sld [smem:[#allocation6 + $0x2]]
        %v182 = vlaneseq
        %v183 = vand.u32 %v182, 127
        %v184 = vadd.s32 %v183, 4294967295
        %v185 = vlaneseq
        %v186 = vshrl.u32 %v185, 7
        %v187 = vsub.s32 %v184, %v186
        %v188 = vrot.slane %v177, %v187
        %vm190 = vcmask 7168
        %v191 = vsel %vm190, 0.0, %v188
        %v192 = vadd.s32 %v183, 1
        %v193 = vlaneseq
        %v194 = vshrl.u32 %v193, 7
        %v195 = vsub.s32 %v192, %v194
        %v196 = vrot.slane %v177, %v195
        %vm198 = vcmask 56320
        %v199 = vsel %vm198, %v196, 0.0
        %v200 = vstv %s178
        %v201 = vmul.f32 %v200, %v191
        %v202 = vstv %s179
        %v203 = vmul.f32 %v202, %v177
        %v205 = vlaneseq
        %v206 = vshrl.u32 %v205, 7
        %v207 = vsub.s32 %v183, %v206
        %v208 = vrot.slane %v203, %v207
        %v210 = vadd.f32 %v201, %v208
        %v211 = vstv %s180
        %v212 = vmul.f32 %v211, %v199
        %v214 = vrot.slane %v212, 1
        %v216 = vadd.f32 %v210, %v214
        %v217 = vxor.u32 %v216, 2147483648
        %v218 = vmul.f32 %v217, 1.442695
        %v219 = vpow.pop %v218
        %v220 = vadd.f32 %v219, 1.0
        %v221 = vrcp.pop %v220
        %v222 = vmul.f32 1.0, %v221
        %v223 = vlaneseq
        %v224 = vshrl.u32 %v223, 7
        %v225 = vsub.s32 0, %v224
        %v226 = vrot.slane %v222, %v225
        %228 = vbcast.lane.b32.xlu0 %v226, 256
        %v229 = vpop.permute.xlu0 %228
        %v230 = vmul.f32 %v172, %v229
        %v231 = vmul.f32 %v173, %v229
        %232 = vst [vmem:[%s171] sm:$0xff] %v230
        %233 = vst [vmem:[%s171 + $0x8] sm:$0xff] %v231
        %s234 = sand.u32 %s75, 1
        %s235 = scalar_lea.sflag [#allocation4], %s234
        %s236 = sand.u32 %s75, 1
        %s237 = smul.addr %s236, 16
        %s238 = scalar_lea.vmem [#allocation7], %s237
        // Predicated region
        $region37: #{eca_pallas.1} parent=27 // pred_check
          %p239 = pneg %p85
        $region38: #{eca_pallas.1} parent=27 // pred_check_branch
          %241 = sbr.rel (%p239) target = $region40
        $region39: #{eca_pallas.1} parent=27 // pred_region
          %s243 = ssub.s32 256, 256
          %244 = vsyncadd %s235, %s243
          %s245 = smul.addr %s20, 2
          %s246 = smul.addr %s245, 128
          %s247 = scalar_lea.hbm %s2, %s246
          %s249 = sshll.u32 %s238, 4
          %s250 = int_to_ptr.vmem [resolvable:$true] %s249
          %252 = dma.vmem_to_hbm [thread:$0]  %s250, 256, %s247, %s235
        $region40: #{eca_pallas.1} parent=27 // pred_fallthru
          _
      $region28: #{eca_pallas.1} parent=5 // pred_fallthru
        _
      %p253 = scmp.le.s32.totalorder 2, %s15
      // Predicated region
      $region41: #{eca_pallas.1} parent=5 // pred_check
        %p254 = pneg %p253
      $region42: #{eca_pallas.1} parent=5 // pred_check_branch
        %256 = sbr.rel (%p254) target = $region44
      $region43: #{eca_pallas.1} parent=5 // pred_region
        %s257 = ssub.s32 %s15, 2
        // Predicated region
        $region45: #{eca_pallas.1} parent=43 // pred_check
          %p258 = pneg %p91
        $region46: #{eca_pallas.1} parent=43 // pred_check_branch
          %260 = sbr.rel (%p258) target = $region48
        $region47: #{eca_pallas.1} parent=43 // pred_region
          %s261 = sand.u32 %s76, 1
          %s262 = scalar_lea.sflag [#allocation4], %s261
          %s263 = sand.u32 %s76, 1
          %s264 = smul.addr %s263, 16
          %s265 = scalar_lea.vmem [#allocation7], %s264
          %266 = dma.done %s262, 256
        $region48: #{eca_pallas.1} parent=43 // pred_fallthru
          _
      $region44: #{eca_pallas.1} parent=5 // pred_fallthru
        _
    $region6: #{eca_pallas.1} parent=1 // loop_footer
      %s19 = sadd.s32 1, %s15
    $region7: #{eca_pallas.1} parent=1 // loop_footer_branch
      %14 = sbr.rel target = $region3
    $region8: #{eca_pallas.1} parent=1 // loop_exit
      _
    %267 = vsyncpa [#allocation3], 1
    %s268 = scalar_lea.sflag [#allocation3], 1
    %269 = vsyncpa %s268, 1
    %270 = vsyncpa [#allocation4], 1
    %s271 = scalar_lea.sflag [#allocation4], 1
    %272 = vsyncpa %s271, 1
    %273 = vsyncpa [#allocation5], 1
    %s274 = scalar_lea.sflag [#allocation5], 1
    %275 = vsyncpa %s274, 1

</llo_original>
